<compile_context>
chip_gen: v6e
topology: v6e:2x2x1
jax: 0.10.0
libtpu: 0.0.40
codegen_flags: <defaults>
</compile_context>

<pallas_src>
import functools

import jax
import jax.numpy as jnp
from jax import lax
from jax.experimental import pallas as pl
from jax.experimental.pallas import tpu as pltpu


def _attention_kernel(len_ref,     # SMEM (Bp,) int32   -- scalar prefetch
                      q_ref,       # VMEM (BB, Tq, H)   matmul dtype
                      e_ref,       # VMEM (BB, Ts, H)   matmul dtype
                      w_in_ref,    # VMEM (H, H)        linear_in.weight^T
                      w_oq_ref,    # VMEM (H, H)        linear_out.weight[:, :H]^T
                      w_oc_ref,    # VMEM (H, H)        linear_out.weight[:, H:]^T
                      b_ref,       # VMEM (1, H)        linear_out.bias (f32)
                      o_ref,       # VMEM (BB, Tq, H)   f32
                      *, block_b, tq, ts, h):
    base = pl.program_id(0) * block_b

    q = q_ref[...]                                   # (BB, Tq, H)
    e = e_ref[...]                                   # (BB, Ts, H)
    q_flat = q.reshape(block_b * tq, h)              # fold batch into MXU rows

    # z = linear_in(query): one flat (BB*Tq, H) @ (H, H) matmul, f32 accum.
    z_flat = jnp.dot(q_flat, w_in_ref[...], preferred_element_type=jnp.float32)
    z = z_flat.astype(e.dtype).reshape(block_b, tq, h)

    # attn_scores = bmm(z, encoder_outputs^T) -> (BB, Tq, Ts), f32 accum.
    scores = jnp.einsum('bqh,bsh->bqs', z, e, preferred_element_type=jnp.float32)

    # Mask source positions >= src_length with a large finite negative
    # (avoids inf - inf = NaN for fully masked rows / length == 0).
    lens_blk = [jnp.full((1, 1, 1), len_ref[base + i], dtype=jnp.int32)
                for i in range(block_b)]
    lens = lens_blk[0] if block_b == 1 else jnp.concatenate(lens_blk, axis=0)
    col = lax.broadcasted_iota(jnp.int32, (block_b, tq, ts), 2)
    scores = jnp.where(col >= lens, jnp.float32(-1e30), scores)

    # softmax over the source dimension (f32; exp on EUP, approx rcp on EUP).
    m = jnp.max(scores, axis=-1, keepdims=True)
    p = jnp.exp(scores - m)
    attn = p * pl.reciprocal(jnp.sum(p, axis=-1, keepdims=True), approx=True)

    # context c = bmm(attn_weights, encoder_outputs) -> (BB, Tq, H)
    c = jnp.einsum('bqs,bsh->bqh', attn.astype(e.dtype), e,
                   preferred_element_type=jnp.float32)
    c_flat = c.reshape(block_b * tq, h)

    # attn_out = tanh(linear_out([query, c]))
    #   cat([q, c]) @ W_out^T + b == q @ W_out[:, :H]^T + c @ W_out[:, H:]^T + b
    out = (jnp.dot(q_flat, w_oq_ref[...], preferred_element_type=jnp.float32)
           + jnp.dot(c_flat.astype(w_oc_ref.dtype), w_oc_ref[...],
                     preferred_element_type=jnp.float32)
           + b_ref[...])
    o_ref[...] = jnp.tanh(out).reshape(block_b, tq, h)


def _choose_block_b(batch, tq, target_rows=256):
    """Batch elements per grid step: aim to fill the MXU M dimension
    (~256 rows on v6e/v7x) while keeping >= 2 grid steps (v7x has 2 TCs)."""
    bb_cap = max(1, target_rows // max(tq, 1))
    min_grid = 1 if batch == 1 else 2
    grid = max(min_grid, pl.cdiv(batch, bb_cap))
    return pl.cdiv(batch, grid)


@functools.partial(jax.jit, static_argnames=("block_b", "matmul_dtype"))
def attention_pallas(query, encoder_outputs, src_lengths, w_in, w_out, b_out,
                     *, block_b=None, matmul_dtype=jnp.float32):
    """query (B,Tq,H) f32, encoder_outputs (B,Ts,H) f32, src_lengths (B,) int,
    w_in (H,H) = linear_in.weight, w_out (H,2H) = linear_out.weight,
    b_out (H,) = linear_out.bias.  Returns (B,Tq,H) f32."""
    B, Tq, H = query.shape
    _, Ts, _ = encoder_outputs.shape

    if block_b is None:
        block_b = _choose_block_b(B, Tq)
    num_blocks = pl.cdiv(B, block_b)
    Bp = num_blocks * block_b

    q = query.astype(matmul_dtype)
    e = encoder_outputs.astype(matmul_dtype)
    lens = src_lengths.astype(jnp.int32)
    if Bp != B:
        pad = Bp - B
        q = jnp.pad(q, ((0, pad), (0, 0), (0, 0)))
        e = jnp.pad(e, ((0, pad), (0, 0), (0, 0)))
        lens = jnp.pad(lens, (0, pad), constant_values=Ts)

    # Wrapper-side weight prep: transpose + split the concat halves so the
    # kernel never materializes cat([query, c]).
    w_in_t = w_in.T.astype(matmul_dtype)           # (H, H)
    w_oq_t = w_out[:, :H].T.astype(matmul_dtype)   # query half,   (H, H)
    w_oc_t = w_out[:, H:].T.astype(matmul_dtype)   # context half, (H, H)
    b_row = b_out.reshape(1, H).astype(jnp.float32)

    kernel = functools.partial(_attention_kernel,
                               block_b=block_b, tq=Tq, ts=Ts, h=H)

    grid_spec = pltpu.PrefetchScalarGridSpec(
        num_scalar_prefetch=1,
        grid=(num_blocks,),
        in_specs=[
            pl.BlockSpec((block_b, Tq, H), lambda i, _lens: (i, 0, 0)),  # query
            pl.BlockSpec((block_b, Ts, H), lambda i, _lens: (i, 0, 0)),  # encoder
            pl.BlockSpec((H, H), lambda i, _lens: (0, 0)),               # w_in^T
            pl.BlockSpec((H, H), lambda i, _lens: (0, 0)),               # w_out_q^T
            pl.BlockSpec((H, H), lambda i, _lens: (0, 0)),               # w_out_c^T
            pl.BlockSpec((1, H), lambda i, _lens: (0, 0)),               # bias
        ],
        out_specs=pl.BlockSpec((block_b, Tq, H), lambda i, _lens: (i, 0, 0)),
    )

    out = pl.pallas_call(
        kernel,
        out_shape=jax.ShapeDtypeStruct((Bp, Tq, H), jnp.float32),
        grid_spec=grid_spec,
        compiler_params=pltpu.CompilerParams(
            dimension_semantics=("parallel",)),
    )(lens, q, e, w_in_t, w_oq_t, w_oc_t, b_row)

    return out[:B] if Bp != B else out


def attention_reference(query, encoder_outputs, src_lengths, w_in, w_out, b_out):
    """Pure-JAX mirror of the PyTorch forward, for verification."""
    B, Tq, H = query.shape
    Ts = encoder_outputs.shape[1]
    z = query @ w_in.T
    scores = jnp.einsum('bqh,bsh->bqs', z, encoder_outputs)
    pos = jnp.arange(Ts)[None, :]                      # (1, Ts)
    pad = pos >= src_lengths[:, None]                  # (B, Ts) True where padded
    scores = jnp.where(pad[:, None, :], -jnp.inf, scores)
    w = jax.nn.softmax(scores, axis=2)
    c = jnp.einsum('bqs,bsh->bqh', w, encoder_outputs)
    cat = jnp.concatenate([query, c], axis=2)
    return jnp.tanh(cat @ w_out.T + b_out)


if __name__ == "__main__":
    B, Tq, Ts, H = 2, 8, 8, 32

    key = jax.random.PRNGKey(0)
    kq, ke, kw1, kw2, kb = jax.random.split(key, 5)

    query = jax.random.normal(kq, (B, Tq, H), dtype=jnp.float32)
    encoder_outputs = jax.random.normal(ke, (B, Ts, H), dtype=jnp.float32)
    src_lengths = jnp.array([Ts, 5], dtype=jnp.int32)   # max length == Ts

    # Deterministic parameter init (nn.Linear-style uniform bounds).
    bound_in = 1.0 / (H ** 0.5)
    bound_out = 1.0 / ((2 * H) ** 0.5)
    w_in = jax.random.uniform(kw1, (H, H), jnp.float32, -bound_in, bound_in)
    w_out = jax.random.uniform(kw2, (H, 2 * H), jnp.float32, -bound_out, bound_out)
    b_out = jax.random.uniform(kb, (H,), jnp.float32, -bound_out, bound_out)

    ref = attention_reference(query, encoder_outputs, src_lengths,
                              w_in, w_out, b_out)

    # f32 matmul path (tight-ish check; approx reciprocal is the only approx).
    out = attention_pallas(query, encoder_outputs, src_lengths,
                           w_in, w_out, b_out)
    out = jax.block_until_ready(out)
    assert out.shape == (B, Tq, H)
    assert jnp.allclose(out, ref, atol=1e-2, rtol=1e-2), "f32 mismatch vs reference"

    # bf16 matmul-operand path (v6e/v7x/v5e MXU + DMA-byte win); f32 elementwise.
    out_bf16 = attention_pallas(query, encoder_outputs, src_lengths,
                                w_in, w_out, b_out, matmul_dtype=jnp.bfloat16)
    out_bf16 = jax.block_until_ready(out_bf16)
    assert out_bf16.shape == (B, Tq, H)
    assert jnp.allclose(out_bf16, ref, atol=1.5e-1, rtol=1.5e-1), \
        "bf16 mismatch vs reference"

    print("KERNEL_OK")
</pallas_src>

<mosaic_0001>
module attributes {stable_mosaic.version = 11 : i64} {
  func.func @_attention_kernel(%arg0: i32, %arg1: memref<2xi32, #tpu.memory_space<smem>>, %arg2: memref<1x8x32xf32, #tpu.memory_space<vmem>>, %arg3: memref<1x8x32xf32, #tpu.memory_space<vmem>>, %arg4: memref<32x32xf32, #tpu.memory_space<vmem>>, %arg5: memref<32x32xf32, #tpu.memory_space<vmem>>, %arg6: memref<32x32xf32, #tpu.memory_space<vmem>>, %arg7: memref<1x32xf32, #tpu.memory_space<vmem>>, %arg8: memref<1x8x32xf32, #tpu.memory_space<vmem>>) attributes {dimension_semantics = [#tpu.dimension_semantics<parallel>], iteration_bounds = array<i64: 2>, scalar_prefetch = 1 : i64, scratch_operands = 0 : i64, tpu.core_type = #tpu.core_type<tc>, window_params = [{transform_indices = @transform_0, window_bounds = array<i64: 1, 8, 32>}, {transform_indices = @transform_1, window_bounds = array<i64: 1, 8, 32>}, {pipeline_mode = #tpu.pipeline_mode<synchronous>, transform_indices = @transform_2, window_bounds = array<i64: 32, 32>}, {pipeline_mode = #tpu.pipeline_mode<synchronous>, transform_indices = @transform_3, window_bounds = array<i64: 32, 32>}, {pipeline_mode = #tpu.pipeline_mode<synchronous>, transform_indices = @transform_4, window_bounds = array<i64: 32, 32>}, {pipeline_mode = #tpu.pipeline_mode<synchronous>, transform_indices = @transform_5, window_bounds = array<i64: 1, 32>}, {transform_indices = @transform_6, window_bounds = array<i64: 1, 8, 32>}]} {
    %c1_i32 = arith.constant 1 : i32
    %0 = arith.muli %arg0, %c1_i32 : i32
    %c0 = arith.constant 0 : index
    %c0_0 = arith.constant 0 : index
    %c0_1 = arith.constant 0 : index
    %1 = vector.load %arg2[%c0, %c0_0, %c0_1] : memref<1x8x32xf32, #tpu.memory_space<vmem>>, vector<1x8x32xf32>
    %c0_2 = arith.constant 0 : index
    %c0_3 = arith.constant 0 : index
    %c0_4 = arith.constant 0 : index
    %2 = vector.load %arg3[%c0_2, %c0_3, %c0_4] : memref<1x8x32xf32, #tpu.memory_space<vmem>>, vector<1x8x32xf32>
    %3 = vector.shape_cast %1 : vector<1x8x32xf32> to vector<8x32xf32>
    %c0_5 = arith.constant 0 : index
    %c0_6 = arith.constant 0 : index
    %4 = vector.load %arg4[%c0_5, %c0_6] : memref<32x32xf32, #tpu.memory_space<vmem>>, vector<32x32xf32>
    %cst = arith.constant dense<0.000000e+00> : vector<8x32xf32>
    %5 = tpu.matmul %3, %4, %cst {dimension_numbers = #tpu.dot_dimension_numbers<[1], [0], [0], [1], [0, 0, 1, 1], [], []>} : vector<8x32xf32>, vector<32x32xf32>, vector<8x32xf32> -> vector<8x32xf32>
    %6 = vector.shape_cast %5 : vector<8x32xf32> to vector<1x8x32xf32>
    "tpu.trace_start"() <{level = 10 : i32, message = "bqh,bsh->bqs"}> : () -> ()
    %cst_7 = arith.constant dense<0.000000e+00> : vector<1x8x8xf32>
    %7 = tpu.matmul %6, %2, %cst_7 {dimension_numbers = #tpu.dot_dimension_numbers<[2], [2], [1], [1], [0, 0, 0, 1, 1, 1], [0], [0]>} : vector<1x8x32xf32>, vector<1x8x32xf32>, vector<1x8x8xf32> -> vector<1x8x8xf32>
    "tpu.trace_stop"() : () -> ()
    %c0_i32 = arith.constant 0 : i32
    %8 = arith.addi %0, %c0_i32 : i32
    %9 = arith.index_cast %8 : i32 to index
    %10 = memref.load %arg1[%9] : memref<2xi32, #tpu.memory_space<smem>>
    %11 = vector.broadcast %10 : i32 to vector<1x1x1xi32>
    %12 = tpu.iota {dimensions = array<i32: 2>} : vector<1x8x8xi32>
    %13 = vector.broadcast %11 : vector<1x1x1xi32> to vector<1x8x8xi32>
    %14 = arith.cmpi sge, %12, %13 : vector<1x8x8xi32>
    %cst_8 = arith.constant -1.000000e+30 : f32
    %15 = vector.broadcast %cst_8 : f32 to vector<1x8x8xf32>
    %16 = arith.select %14, %15, %7 : vector<1x8x8xi1>, vector<1x8x8xf32>
    %cst_9 = arith.constant dense<0xFF800000> : vector<1x8xf32>
    %17 = vector.multi_reduction <maximumf>, %16, %cst_9 [2] : vector<1x8x8xf32> to vector<1x8xf32>
    %18 = vector.shape_cast %17 : vector<1x8xf32> to vector<1x8x1xf32>
    %19 = vector.broadcast %18 : vector<1x8x1xf32> to vector<1x8x8xf32>
    %20 = arith.subf %16, %19 : vector<1x8x8xf32>
    %21 = math.exp %20 : vector<1x8x8xf32>
    %cst_10 = arith.constant dense<0.000000e+00> : vector<1x8xf32>
    %22 = vector.multi_reduction <add>, %21, %cst_10 [2] : vector<1x8x8xf32> to vector<1x8xf32>
    %23 = vector.shape_cast %22 : vector<1x8xf32> to vector<1x8x1xf32>
    %24 = tpu.reciprocal %23 {approx = true} : vector<1x8x1xf32> -> vector<1x8x1xf32>
    %25 = vector.broadcast %24 : vector<1x8x1xf32> to vector<1x8x8xf32>
    %26 = arith.mulf %21, %25 : vector<1x8x8xf32>
    "tpu.trace_start"() <{level = 10 : i32, message = "bqs,bsh->bqh"}> : () -> ()
    %cst_11 = arith.constant dense<0.000000e+00> : vector<1x8x32xf32>
    %27 = tpu.matmul %26, %2, %cst_11 {dimension_numbers = #tpu.dot_dimension_numbers<[2], [1], [1], [2], [0, 0, 0, 1, 1, 2], [0], [0]>} : vector<1x8x8xf32>, vector<1x8x32xf32>, vector<1x8x32xf32> -> vector<1x8x32xf32>
    "tpu.trace_stop"() : () -> ()
    %28 = vector.shape_cast %27 : vector<1x8x32xf32> to vector<8x32xf32>
    %c0_12 = arith.constant 0 : index
    %c0_13 = arith.constant 0 : index
    %29 = vector.load %arg5[%c0_12, %c0_13] : memref<32x32xf32, #tpu.memory_space<vmem>>, vector<32x32xf32>
    %cst_14 = arith.constant dense<0.000000e+00> : vector<8x32xf32>
    %30 = tpu.matmul %3, %29, %cst_14 {dimension_numbers = #tpu.dot_dimension_numbers<[1], [0], [0], [1], [0, 0, 1, 1], [], []>} : vector<8x32xf32>, vector<32x32xf32>, vector<8x32xf32> -> vector<8x32xf32>
    %c0_15 = arith.constant 0 : index
    %c0_16 = arith.constant 0 : index
    %31 = vector.load %arg6[%c0_15, %c0_16] : memref<32x32xf32, #tpu.memory_space<vmem>>, vector<32x32xf32>
    %cst_17 = arith.constant dense<0.000000e+00> : vector<8x32xf32>
    %32 = tpu.matmul %28, %31, %cst_17 {dimension_numbers = #tpu.dot_dimension_numbers<[1], [0], [0], [1], [0, 0, 1, 1], [], []>} : vector<8x32xf32>, vector<32x32xf32>, vector<8x32xf32> -> vector<8x32xf32>
    %33 = arith.addf %30, %32 : vector<8x32xf32>
    %c0_18 = arith.constant 0 : index
    %c0_19 = arith.constant 0 : index
    %34 = vector.load %arg7[%c0_18, %c0_19] : memref<1x32xf32, #tpu.memory_space<vmem>>, vector<1x32xf32>
    %35 = vector.broadcast %34 : vector<1x32xf32> to vector<8x32xf32>
    %36 = arith.addf %33, %35 : vector<8x32xf32>
    %37 = math.tanh %36 : vector<8x32xf32>
    %38 = vector.shape_cast %37 : vector<8x32xf32> to vector<1x8x32xf32>
    %c0_20 = arith.constant 0 : index
    %c0_21 = arith.constant 0 : index
    %c0_22 = arith.constant 0 : index
    %39 = vector.load %arg8[%c0_20, %c0_21, %c0_22] : memref<1x8x32xf32, #tpu.memory_space<vmem>>, vector<1x8x32xf32>
    tpu.vector_store %arg8[%c0_20, %c0_21, %c0_22], %38 {strides = array<i32>} : memref<1x8x32xf32, #tpu.memory_space<vmem>>, vector<1x8x32xf32>,
    return
  }
  func.func @transform_0(%arg0: i32, %arg1: memref<2xi32, #tpu.memory_space<smem>>) -> (i32, i32, i32) {
    %c0_i32 = arith.constant 0 : i32
    %c0_i32_0 = arith.constant 0 : i32
    %c0_i32_1 = arith.constant 0 : i32
    return %arg0, %c0_i32, %c0_i32_0 : i32, i32, i32
  }
  func.func @transform_1(%arg0: i32, %arg1: memref<2xi32, #tpu.memory_space<smem>>) -> (i32, i32, i32) {
    %c0_i32 = arith.constant 0 : i32
    %c0_i32_0 = arith.constant 0 : i32
    %c0_i32_1 = arith.constant 0 : i32
    return %arg0, %c0_i32, %c0_i32_0 : i32, i32, i32
  }
  func.func @transform_2(%arg0: i32, %arg1: memref<2xi32, #tpu.memory_space<smem>>) -> (i32, i32) {
    %c0_i32 = arith.constant 0 : i32
    %c0_i32_0 = arith.constant 0 : i32
    %c0_i32_1 = arith.constant 0 : i32
    return %c0_i32, %c0_i32_0 : i32, i32
  }
  func.func @transform_3(%arg0: i32, %arg1: memref<2xi32, #tpu.memory_space<smem>>) -> (i32, i32) {
    %c0_i32 = arith.constant 0 : i32
    %c0_i32_0 = arith.constant 0 : i32
    %c0_i32_1 = arith.constant 0 : i32
    return %c0_i32, %c0_i32_0 : i32, i32
  }
  func.func @transform_4(%arg0: i32, %arg1: memref<2xi32, #tpu.memory_space<smem>>) -> (i32, i32) {
    %c0_i32 = arith.constant 0 : i32
    %c0_i32_0 = arith.constant 0 : i32
    %c0_i32_1 = arith.constant 0 : i32
    return %c0_i32, %c0_i32_0 : i32, i32
  }
  func.func @transform_5(%arg0: i32, %arg1: memref<2xi32, #tpu.memory_space<smem>>) -> (i32, i32) {
    %c0_i32 = arith.constant 0 : i32
    %c0_i32_0 = arith.constant 0 : i32
    %c0_i32_1 = arith.constant 0 : i32
    return %c0_i32, %c0_i32_0 : i32, i32
  }
  func.func @transform_6(%arg0: i32, %arg1: memref<2xi32, #tpu.memory_space<smem>>) -> (i32, i32, i32) {
    %c0_i32 = arith.constant 0 : i32
    %c0_i32_0 = arith.constant 0 : i32
    %c0_i32_1 = arith.constant 0 : i32
    return %arg0, %c0_i32, %c0_i32_0 : i32, i32, i32
  }
}

</mosaic_0001>

<llo_original>
// kernel: attention_pallas.1
$region0: #{attention_pallas.1}
  #allocation0 [shape = 'u32[]', space=smem, size = 0x4, offset = 0x4, fixed_abs, tag = 'smem constant byte address 0x4 - core index']
  #allocation1 [shape = 'u32[144,128]{1,0:T(1,128)}', space=vmem, size = 0x12000, scoped, tag = 'internal scratch']
  #allocation2 [shape = 's32[1]{0}', space=sflag, size = 0x4, scoped, tag = 'scoped memory for attention_pallas.1']
  #allocation3 [shape = 'u8[512]{0}', space=smem, size = 0x200, scoped, tag = 'prefetched SMEM operand 0']
  %s0 = inlined_call_operand.vmem [shape: s32[2], index: 0, kind: input, shape index: {}]
  %s1 = inlined_call_operand.vmem [shape: f32[2,8,32], index: 1, kind: input, shape index: {}]
  %s2 = inlined_call_operand.vmem [shape: f32[2,8,32], index: 2, kind: input, shape index: {}]
  %s3 = inlined_call_operand.vmem [shape: f32[32,32], index: 3, kind: input, shape index: {}]
  %s4 = inlined_call_operand.vmem [shape: f32[32,32], index: 4, kind: input, shape index: {}]
  %s5 = inlined_call_operand.vmem [shape: f32[32,32], index: 5, kind: input, shape index: {}]
  %s6 = inlined_call_operand.vmem [shape: f32[1,32], index: 6, kind: input, shape index: {}]
  %s7 = inlined_call_operand.hbm [shape: f32[2,8,32], index: 7, kind: output, shape index: {}]
  %s8 = sld [smem:[#allocation0]]
  $region57: #{attention_pallas.1} parent=0
    _
  %s10 = ssub.s32 1, %s8
  %s11 = scalar_select 0, %s10, %s8
  %s12 = sshll.u32 %s0, 4
  %s13 = int_to_ptr.vmem [resolvable:$true] %s12
  %15 = dma.vmem_to_smem %s13, 16, [#allocation3], [#allocation2]
  %16 = dma.done [#allocation2], 16
  %17 = sfence
  $region1: #{attention_pallas.1} parent=0
    #allocation4 [shape = 'u8[8192]{0}', space=vmem, size = 0x2000, scoped, tag = 'output window, operand 0']
    #allocation5 [shape = 's32[2]{0}', space=sflag, size = 0x8, scoped, tag = 'scoped memory for attention_pallas.1']
    %18 = vsyncpa [#allocation5], 0
    %s19 = scalar_lea.sflag [#allocation5], 1
    %20 = vsyncpa %s19, 0
    loop: start=0, step=1, limit=4
    $region2: #{attention_pallas.1} parent=1 // loop_pre_header
      _
    $region3: #{attention_pallas.1} parent=1 // loop_header
      %s22 = sphi 0, %s26
      %p23 = scmp.ge.s32.totalorder %s22, 4
      %s32 = sphi 0, %s34
      %s35 = sphi 0, %s32
      %s36 = sphi 0, %s35
      %s52 = sphi 0, %s36
      %s58 = sphi 0, %s60
      %s61 = sphi 0, %s58
      %s62 = sphi 0, %s61
      %s78 = sphi 0, %s62
      %s82 = sphi 0, %s82
      %s84 = sphi 0, %s82
      %s85 = sphi 0, %s84
      %s99 = sphi 0, %s85
      %s103 = sphi 0, %s103
      %s105 = sphi 0, %s103
      %s106 = sphi 0, %s105
      %s120 = sphi 0, %s106
      %s124 = sphi 0, %s124
      %s126 = sphi 0, %s124
      %s127 = sphi 0, %s126
      %s141 = sphi 0, %s127
      %s145 = sphi 0, %s145
      %s147 = sphi 0, %s145
      %s148 = sphi 0, %s147
      %s162 = sphi 0, %s148
      %s168 = sphi 0, %s170
      %s171 = sphi 0, %s168
      %s172 = sphi 0, %s171
      %s188 = sphi 0, %s172
    $region4: #{attention_pallas.1} parent=1 // loop_header_branch
      %25 = sbr.rel (%p23) target = $region8
    $region5: #{attention_pallas.1} parent=1 // loop_body
      %s27 = ssub.s32 %s22, 1
      %s28 = ssub.s32 %s22, 2
      %s29 = sadd.s32 %s22, 1
      %s30 = ssub.s32 %s22, %s29
      %p31 = scmp.eq.s32.totalorder %s30, 0
      %s33 = sadd.s32 %s32, 1
      %s34 = scalar_select %p31, %s32, %s33
      %p37 = pneg %p31
      %p38 = scmp.eq.s32.totalorder %s22, 1
      %p39 = por %p37, %p38
      %p40 = scmp.ne.s32.totalorder %s32, %s35
      %p41 = scmp.eq.s32.totalorder %s22, 0
      %p42 = por %p40, %p41
      %p43 = scmp.ne.s32.totalorder %s32, %s35
      %p44 = scmp.eq.s32.totalorder %s27, 1
      %p45 = por %p43, %p44
      %p46 = scmp.ne.s32.totalorder %s35, %s36
      %p47 = scmp.eq.s32.totalorder %s27, 0
      %p48 = por %p46, %p47
      %p49 = scmp.ne.s32.totalorder %s35, %s36
      %p50 = scmp.eq.s32.totalorder %s28, 1
      %p51 = por %p49, %p50
      %p53 = scmp.ne.s32.totalorder %s36, %s52
      %p54 = scmp.eq.s32.totalorder %s28, 0
      %p55 = por %p53, %p54
      %s56 = ssub.s32 %s22, %s29
      %p57 = scmp.eq.s32.totalorder %s56, 0
      %s59 = sadd.s32 %s58, 1
      %s60 = scalar_select %p57, %s58, %s59
      %p63 = pneg %p57
      %p64 = scmp.eq.s32.totalorder %s22, 1
      %p65 = por %p63, %p64
      %p66 = scmp.ne.s32.totalorder %s58, %s61
      %p67 = scmp.eq.s32.totalorder %s22, 0
      %p68 = por %p66, %p67
      %p69 = scmp.ne.s32.totalorder %s58, %s61
      %p70 = scmp.eq.s32.totalorder %s27, 1
      %p71 = por %p69, %p70
      %p72 = scmp.ne.s32.totalorder %s61, %s62
      %p73 = scmp.eq.s32.totalorder %s27, 0
      %p74 = por %p72, %p73
      %p75 = scmp.ne.s32.totalorder %s61, %s62
      %p76 = scmp.eq.s32.totalorder %s28, 1
      %p77 = por %p75, %p76
      %p79 = scmp.ne.s32.totalorder %s62, %s78
      %p80 = scmp.eq.s32.totalorder %s28, 0
      %p81 = por %p79, %p80
      %s83 = sadd.s32 %s82, 1
      %p86 = scmp.eq.s32.totalorder %s22, 1
      %p87 = scmp.ne.s32.totalorder %s82, %s84
      %p88 = scmp.eq.s32.totalorder %s22, 0
      %p89 = por %p87, %p88
      %p90 = scmp.ne.s32.totalorder %s82, %s84
      %p91 = scmp.eq.s32.totalorder %s27, 1
      %p92 = por %p90, %p91
      %p93 = scmp.ne.s32.totalorder %s84, %s85
      %p94 = scmp.eq.s32.totalorder %s27, 0
      %p95 = por %p93, %p94
      %p96 = scmp.ne.s32.totalorder %s84, %s85
      %p97 = scmp.eq.s32.totalorder %s28, 1
      %p98 = por %p96, %p97
      %p100 = scmp.ne.s32.totalorder %s85, %s99
      %p101 = scmp.eq.s32.totalorder %s28, 0
      %p102 = por %p100, %p101
      %s104 = sadd.s32 %s103, 1
      %p107 = scmp.eq.s32.totalorder %s22, 1
      %p108 = scmp.ne.s32.totalorder %s103, %s105
      %p109 = scmp.eq.s32.totalorder %s22, 0
      %p110 = por %p108, %p109
      %p111 = scmp.ne.s32.totalorder %s103, %s105
      %p112 = scmp.eq.s32.totalorder %s27, 1
      %p113 = por %p111, %p112
      %p114 = scmp.ne.s32.totalorder %s105, %s106
      %p115 = scmp.eq.s32.totalorder %s27, 0
      %p116 = por %p114, %p115
      %p117 = scmp.ne.s32.totalorder %s105, %s106
      %p118 = scmp.eq.s32.totalorder %s28, 1
      %p119 = por %p117, %p118
      %p121 = scmp.ne.s32.totalorder %s106, %s120
      %p122 = scmp.eq.s32.totalorder %s28, 0
      %p123 = por %p121, %p122
      %s125 = sadd.s32 %s124, 1
      %p128 = scmp.eq.s32.totalorder %s22, 1
      %p129 = scmp.ne.s32.totalorder %s124, %s126
      %p130 = scmp.eq.s32.totalorder %s22, 0
      %p131 = por %p129, %p130
      %p132 = scmp.ne.s32.totalorder %s124, %s126
      %p133 = scmp.eq.s32.totalorder %s27, 1
      %p134 = por %p132, %p133
      %p135 = scmp.ne.s32.totalorder %s126, %s127
      %p136 = scmp.eq.s32.totalorder %s27, 0
      %p137 = por %p135, %p136
      %p138 = scmp.ne.s32.totalorder %s126, %s127
      %p139 = scmp.eq.s32.totalorder %s28, 1
      %p140 = por %p138, %p139
      %p142 = scmp.ne.s32.totalorder %s127, %s141
      %p143 = scmp.eq.s32.totalorder %s28, 0
      %p144 = por %p142, %p143
      %s146 = sadd.s32 %s145, 1
      %p149 = scmp.eq.s32.totalorder %s22, 1
      %p150 = scmp.ne.s32.totalorder %s145, %s147
      %p151 = scmp.eq.s32.totalorder %s22, 0
      %p152 = por %p150, %p151
      %p153 = scmp.ne.s32.totalorder %s145, %s147
      %p154 = scmp.eq.s32.totalorder %s27, 1
      %p155 = por %p153, %p154
      %p156 = scmp.ne.s32.totalorder %s147, %s148
      %p157 = scmp.eq.s32.totalorder %s27, 0
      %p158 = por %p156, %p157
      %p159 = scmp.ne.s32.totalorder %s147, %s148
      %p160 = scmp.eq.s32.totalorder %s28, 1
      %p161 = por %p159, %p160
      %p163 = scmp.ne.s32.totalorder %s148, %s162
      %p164 = scmp.eq.s32.totalorder %s28, 0
      %p165 = por %p163, %p164
      %s166 = ssub.s32 %s22, %s29
      %p167 = scmp.eq.s32.totalorder %s166, 0
      %s169 = sadd.s32 %s168, 1
      %s170 = scalar_select %p167, %s168, %s169
      %p173 = pneg %p167
      %p174 = scmp.eq.s32.totalorder %s22, 1
      %p175 = por %p173, %p174
      %p176 = scmp.ne.s32.totalorder %s168, %s171
      %p177 = scmp.eq.s32.totalorder %s22, 0
      %p178 = por %p176, %p177
      %p179 = scmp.ne.s32.totalorder %s168, %s171
      %p180 = scmp.eq.s32.totalorder %s27, 1
      %p181 = por %p179, %p180
      %p182 = scmp.ne.s32.totalorder %s171, %s172
      %p183 = scmp.eq.s32.totalorder %s27, 0
      %p184 = por %p182, %p183
      %p185 = scmp.ne.s32.totalorder %s171, %s172
      %p186 = scmp.eq.s32.totalorder %s28, 1
      %p187 = por %p185, %p186
      %p189 = scmp.ne.s32.totalorder %s172, %s188
      %p190 = scmp.eq.s32.totalorder %s28, 0
      %p191 = por %p189, %p190
      %p192 = scmp.le.s32.totalorder 1, %s22
      %p193 = scmp.lt.s32.totalorder %s22, 3
      %p194 = pnand %p192, %p193
      %p195 = pneg %p194
      // Predicated region
      $region9: #{attention_pallas.1} parent=5 // pred_check
        _
      $region10: #{attention_pallas.1} parent=5 // pred_check_branch
        %197 = sbr.rel (%p194) target = $region12
      $region11: #{attention_pallas.1} parent=5 // pred_region
        %s198 = ssub.s32 %s22, 1
        // Predicated region
        $region13: #{attention_pallas.1} parent=11 // pred_check
          %p199 = pneg %p95
        $region14: #{attention_pallas.1} parent=11 // pred_check_branch
          %201 = sbr.rel (%p199) target = $region16
        $region15: #{attention_pallas.1} parent=11 // pred_region
          _
        $region16: #{attention_pallas.1} parent=11 // pred_fallthru
          _
        // Predicated region
        $region17: #{attention_pallas.1} parent=11 // pred_check
          %p202 = pneg %p116
        $region18: #{attention_pallas.1} parent=11 // pred_check_branch
          %204 = sbr.rel (%p202) target = $region20
        $region19: #{attention_pallas.1} parent=11 // pred_region
          _
        $region20: #{attention_pallas.1} parent=11 // pred_fallthru
          _
        // Predicated region
        $region21: #{attention_pallas.1} parent=11 // pred_check
          %p205 = pneg %p137
        $region22: #{attention_pallas.1} parent=11 // pred_check_branch
          %207 = sbr.rel (%p205) target = $region24
        $region23: #{attention_pallas.1} parent=11 // pred_region
          _
        $region24: #{attention_pallas.1} parent=11 // pred_fallthru
          _
        // Predicated region
        $region25: #{attention_pallas.1} parent=11 // pred_check
          %p208 = pneg %p158
        $region26: #{attention_pallas.1} parent=11 // pred_check_branch
          %210 = sbr.rel (%p208) target = $region28
        $region27: #{attention_pallas.1} parent=11 // pred_region
          _
        $region28: #{attention_pallas.1} parent=11 // pred_fallthru
          _
      $region12: #{attention_pallas.1} parent=5 // pred_fallthru
        _
      %p211 = scmp.lt.s32.totalorder %s22, 2
      // Predicated region
      $region29: #{attention_pallas.1} parent=5 // pred_check
        %p212 = pneg %p211
      $region30: #{attention_pallas.1} parent=5 // pred_check_branch
        %214 = sbr.rel (%p212) target = $region32
      $region31: #{attention_pallas.1} parent=5 // pred_region
        // Predicated region
        $region33: #{attention_pallas.1} parent=31 // pred_check
          %p215 = pneg %p42
        $region34: #{attention_pallas.1} parent=31 // pred_check_branch
          %217 = sbr.rel (%p215) target = $region36
        $region35: #{attention_pallas.1} parent=31 // pred_region
          %p218 = scmp.lt.s32.totalorder %s22, 1
          %s219 = scalar_select %p218, %s22, 1
          %s220 = smul.addr %s219, 8
          %s221 = scalar_lea.vmem %s1, %s220
        $region36: #{attention_pallas.1} parent=31 // pred_fallthru
          _
        // Predicated region
        $region37: #{attention_pallas.1} parent=31 // pred_check
          %p222 = pneg %p68
        $region38: #{attention_pallas.1} parent=31 // pred_check_branch
          %224 = sbr.rel (%p222) target = $region40
        $region39: #{attention_pallas.1} parent=31 // pred_region
          %p225 = scmp.lt.s32.totalorder %s22, 1
          %s226 = scalar_select %p225, %s22, 1
          %s227 = smul.addr %s226, 8
          %s228 = scalar_lea.vmem %s2, %s227
        $region40: #{attention_pallas.1} parent=31 // pred_fallthru
          _
      $region32: #{attention_pallas.1} parent=5 // pred_fallthru
        _
      %p229 = scmp.le.s32.totalorder 1, %s22
      %p230 = scmp.lt.s32.totalorder %s22, 3
      %p231 = pnand %p229, %p230
      %p232 = pneg %p231
      // Predicated region
      $region41: #{attention_pallas.1} parent=5 // pred_check
        _
      $region42: #{attention_pallas.1} parent=5 // pred_check_branch
        %234 = sbr.rel (%p231) target = $region44
      $region43: #{attention_pallas.1} parent=5 // pred_region
        %s235 = ssub.s32 %s22, 1
        %p236 = scmp.lt.s32.totalorder %s27, 1
        %s237 = scalar_select %p236, %s27, 1
        %s238 = smul.addr %s237, 8
        %s239 = scalar_lea.vmem %s1, %s238
        %p240 = pneg %p48
        %p241 = pneg %p45
        %p242 = scmp.lt.s32.totalorder %s27, 1
        %s243 = scalar_select %p242, %s27, 1
        %s244 = smul.addr %s243, 8
        %s245 = scalar_lea.vmem %s2, %s244
        %p246 = pneg %p74
        %p247 = pneg %p71
        %p248 = pneg %p95
        %p249 = pneg %p92
        %p250 = pneg %p116
        %p251 = pneg %p113
        %p252 = pneg %p137
        %p253 = pneg %p134
        %p254 = pneg %p158
        %p255 = pneg %p155
        %p256 = pneg %p184
        %p257 = pneg %p181
        %s258 = sand.u32 %s171, 1
        %s259 = scalar_lea.sflag [#allocation5], %s258
        %s260 = sand.u32 %s171, 1
        %s261 = smul.addr %s260, 8
        %s262 = scalar_lea.vmem [#allocation4], %s261
        %p263 = scmp.lt.s32.totalorder %s27, 1
        %s264 = scalar_select %p263, %s27, 1
        %s265 = smul.addr %s264, 8
        %s266 = scalar_lea.vmem %s1, %s265
        %p267 = scmp.lt.s32.totalorder %s27, 1
        %s268 = scalar_select %p267, %s27, 1
        %s269 = smul.addr %s268, 8
        %s270 = scalar_lea.vmem %s2, %s269
        %v271 = vld [vmem:[%s266] sm:$0xff]
        %v272 = vld [vmem:[%s270] sm:$0xff]
        %v273 = vld [vmem:[%s3] sm:$0xff]
        %v274 = vld [vmem:[%s3 + $0x8] sm:$0xff]
        %v275 = vld [vmem:[%s3 + $0x10] sm:$0xff]
        %v276 = vld [vmem:[%s3 + $0x18] sm:$0xff]
        %vm277 = vcmask 261120
        %v279 = vsel %vm277, %v271, 0
        %281 = vmatprep.subr.mxu0 0.0
        %282 = vmatpush1.msra.mxu0 0.0
        %283 = vmatprep.subr.mxu0 0.0
        %284 = vmatpush1.msra.mxu0 0.0
        %285 = vmatprep.subr.mxu0 0.0
        %286 = vmatpush1.msra.mxu0 0.0
        %287 = vmatprep.subr.mxu0 0.0
        %288 = vmatpush1.msra.mxu0 0.0
        %289 = vmatprep.subr.mxu0 0.0
        %290 = vmatpush1.msra.mxu0 0.0
        %291 = vmatprep.subr.mxu0 0.0
        %292 = vmatpush1.msra.mxu0 0.0
        %293 = vmatprep.subr.mxu0 0.0
        %294 = vmatpush1.msra.mxu0 0.0
        %295 = vmatprep.subr.mxu0 0.0
        %296 = vmatpush1.msra.mxu0 0.0
        %297 = vmatprep.subr.mxu0 0.0
        %298 = vmatpush1.msra.mxu0 0.0
        %299 = vmatprep.subr.mxu0 0.0
        %300 = vmatpush1.msra.mxu0 0.0
        %301 = vmatprep.subr.mxu0 0.0
        %302 = vmatpush1.msra.mxu0 0.0
        %303 = vmatprep.subr.mxu0 0.0
        %304 = vmatpush1.msra.mxu0 0.0
        %305 = vmatprep.subr.mxu0 0.0
        %306 = vmatpush1.msra.mxu0 %v276
        %307 = vmatprep.subr.mxu0 0.0
        %308 = vmatpush1.msra.mxu0 %v275
        %309 = vmatprep.subr.mxu0 0.0
        %310 = vmatpush1.msra.mxu0 %v274
        %311 = vmatprep.subr.mxu0 0.0
        %312 = vmatpush1.msra.mxu0 %v273
        %313 = vmatprep.subr.mxu0 0.0
        %314 = vmatpush2.msra.mxu0 0.0
        %315 = vmatprep.subr.mxu0 0.0
        %316 = vmatpush2.msra.mxu0 0.0
        %317 = vmatprep.subr.mxu0 0.0
        %318 = vmatpush2.msra.mxu0 0.0
        %319 = vmatprep.subr.mxu0 0.0
        %320 = vmatpush2.msra.mxu0 0.0
        %321 = vmatprep.subr.mxu0 0.0
        %322 = vmatpush2.msra.mxu0 0.0
        %323 = vmatprep.subr.mxu0 0.0
        %324 = vmatpush2.msra.mxu0 0.0
        %325 = vmatprep.subr.mxu0 0.0
        %326 = vmatpush2.msra.mxu0 0.0
        %327 = vmatprep.subr.mxu0 0.0
        %328 = vmatpush2.msra.mxu0 0.0
        %329 = vmatprep.subr.mxu0 0.0
        %330 = vmatpush2.msra.mxu0 0.0
        %331 = vmatprep.subr.mxu0 0.0
        %332 = vmatpush2.msra.mxu0 0.0
        %333 = vmatprep.subr.mxu0 0.0
        %334 = vmatpush2.msra.mxu0 0.0
        %335 = vmatprep.subr.mxu0 0.0
        %336 = vmatpush2.msra.mxu0 0.0
        %337 = vmatprep.subr.mxu0 0.0
        %338 = vmatpush2.msra.mxu0 0.0
        %339 = vmatprep.subr.mxu0 0.0
        %340 = vmatpush2.msra.mxu0 0.0
        %341 = vmatprep.subr.mxu0 0.0
        %342 = vmatpush2.msra.mxu0 0.0
        %343 = vmatprep.subr.mxu0 0.0
        %344 = vmatpush2.msra.mxu0 0.0
        %345 = vmatprep.mubr.f32.mxu0 0.0
        %346 = vmatmul.mubr.f32.gmra.mxu0 %v279
        %v347 = vpop.f32.mrf.mxu0
        %v348 = vadd.f32 0.0, %v347
        %v349 = vpop.f32.mrf.mxu0
        %350 = vdwg.mxu0
        %v352 = vsel %vm277, %v348, 0
        %v355 = vsel %vm277, %v272, 0
        %357 = vmatprep.subr.mxu0 0.0
        %358 = vmatpush1.xpose.msra.mxu0 0.0
        %359 = vmatprep.subr.mxu0 0.0
        %360 = vmatpush1.xpose.msra.mxu0 0.0
        %361 = vmatprep.subr.mxu0 0.0
        %362 = vmatpush1.xpose.msra.mxu0 0.0
        %363 = vmatprep.subr.mxu0 0.0
        %364 = vmatpush1.xpose.msra.mxu0 0.0
        %365 = vmatprep.subr.mxu0 0.0
        %366 = vmatpush1.xpose.msra.mxu0 0.0
        %367 = vmatprep.subr.mxu0 0.0
        %368 = vmatpush1.xpose.msra.mxu0 0.0
        %369 = vmatprep.subr.mxu0 0.0
        %370 = vmatpush1.xpose.msra.mxu0 0.0
        %371 = vmatprep.subr.mxu0 0.0
        %372 = vmatpush1.xpose.msra.mxu0 0.0
        %373 = vmatprep.subr.mxu0 0.0
        %374 = vmatpush1.xpose.msra.mxu0 0.0
        %375 = vmatprep.subr.mxu0 0.0
        %376 = vmatpush1.xpose.msra.mxu0 0.0
        %377 = vmatprep.subr.mxu0 0.0
        %378 = vmatpush1.xpose.msra.mxu0 0.0
        %379 = vmatprep.subr.mxu0 0.0
        %380 = vmatpush1.xpose.msra.mxu0 0.0
        %381 = vmatprep.subr.mxu0 0.0
        %382 = vmatpush1.xpose.msra.mxu0 0.0
        %383 = vmatprep.subr.mxu0 0.0
        %384 = vmatpush1.xpose.msra.mxu0 0.0
        %385 = vmatprep.subr.mxu0 0.0
        %386 = vmatpush1.xpose.msra.mxu0 0.0
        %387 = vmatprep.subr.mxu0 0.0
        %388 = vmatpush1.xpose.msra.mxu0 %v355
        %389 = vmatprep.subr.mxu0 0.0
        %390 = vmatpush2.xpose.msra.mxu0 0.0
        %391 = vmatprep.subr.mxu0 0.0
        %392 = vmatpush2.xpose.msra.mxu0 0.0
        %393 = vmatprep.subr.mxu0 0.0
        %394 = vmatpush2.xpose.msra.mxu0 0.0
        %395 = vmatprep.subr.mxu0 0.0
        %396 = vmatpush2.xpose.msra.mxu0 0.0
        %397 = vmatprep.subr.mxu0 0.0
        %398 = vmatpush2.xpose.msra.mxu0 0.0
        %399 = vmatprep.subr.mxu0 0.0
        %400 = vmatpush2.xpose.msra.mxu0 0.0
        %401 = vmatprep.subr.mxu0 0.0
        %402 = vmatpush2.xpose.msra.mxu0 0.0
        %403 = vmatprep.subr.mxu0 0.0
        %404 = vmatpush2.xpose.msra.mxu0 0.0
        %405 = vmatprep.subr.mxu0 0.0
        %406 = vmatpush2.xpose.msra.mxu0 0.0
        %407 = vmatprep.subr.mxu0 0.0
        %408 = vmatpush2.xpose.msra.mxu0 0.0
        %409 = vmatprep.subr.mxu0 0.0
        %410 = vmatpush2.xpose.msra.mxu0 0.0
        %411 = vmatprep.subr.mxu0 0.0
        %412 = vmatpush2.xpose.msra.mxu0 0.0
        %413 = vmatprep.subr.mxu0 0.0
        %414 = vmatpush2.xpose.msra.mxu0 0.0
        %415 = vmatprep.subr.mxu0 0.0
        %416 = vmatpush2.xpose.msra.mxu0 0.0
        %417 = vmatprep.subr.mxu0 0.0
        %418 = vmatpush2.xpose.msra.mxu0 0.0
        %419 = vmatprep.subr.mxu0 0.0
        %420 = vmatpush2.xpose.msra.mxu0 0.0
        %421 = vmatprep.mubr.f32.mxu0 0.0
        %422 = vmatmul.mubr.f32.gmra.mxu0 %v352
        %v423 = vpop.f32.mrf.mxu0
        %v424 = vadd.f32 0.0, %v423
        %v425 = vpop.f32.mrf.mxu0
        %426 = vdwg.mxu0
        %s427 = sld [smem:[#allocation3 + %s27]]
        %v428 = vlaneseq
        %v429 = vand.u32 %v428, 127
        %v430 = vstv %s427
        %vm431 = vcmp.ge.s32.totalorder %v429, %v430
        %v432 = vsel %vm431, -1e+30, %v424
        %vm433 = vcmask 64512
        %v434 = vsel %vm433, %v432, -inf
        %435 = vmax.xlane.f32.xlu0 %v434
        %v436 = vpop.xlane.xlu0 %435
        %v437 = vsub.f32 %v432, %v436
        %v438 = vmul.f32 %v437, 1.442695
        %v439 = vpow.pop %v438
        %v440 = vsel %vm433, %v439, 0.0
        %441 = vadd.xlane.f32.xlu0 %v440
        %v442 = vpop.xlane.xlu0 %441
        %v443 = vrcp.pop %v442
        %v444 = vmul.f32 %v439, %v443
        %v446 = vsel %vm433, %v444, 0
        %448 = vmatprep.subr.mxu0 0.0
        %449 = vmatpush1.msra.mxu0 0.0
        %450 = vmatprep.subr.mxu0 0.0
        %451 = vmatpush1.msra.mxu0 0.0
        %452 = vmatprep.subr.mxu0 0.0
        %453 = vmatpush1.msra.mxu0 0.0
        %454 = vmatprep.subr.mxu0 0.0
        %455 = vmatpush1.msra.mxu0 0.0
        %456 = vmatprep.subr.mxu0 0.0
        %457 = vmatpush1.msra.mxu0 0.0
        %458 = vmatprep.subr.mxu0 0.0
        %459 = vmatpush1.msra.mxu0 0.0
        %460 = vmatprep.subr.mxu0 0.0
        %461 = vmatpush1.msra.mxu0 0.0
        %462 = vmatprep.subr.mxu0 0.0
        %463 = vmatpush1.msra.mxu0 0.0
        %464 = vmatprep.subr.mxu0 0.0
        %465 = vmatpush1.msra.mxu0 0.0
        %466 = vmatprep.subr.mxu0 0.0
        %467 = vmatpush1.msra.mxu0 0.0
        %468 = vmatprep.subr.mxu0 0.0
        %469 = vmatpush1.msra.mxu0 0.0
        %470 = vmatprep.subr.mxu0 0.0
        %471 = vmatpush1.msra.mxu0 0.0
        %472 = vmatprep.subr.mxu0 0.0
        %473 = vmatpush1.msra.mxu0 0.0
        %474 = vmatprep.subr.mxu0 0.0
        %475 = vmatpush1.msra.mxu0 0.0
        %476 = vmatprep.subr.mxu0 0.0
        %477 = vmatpush1.msra.mxu0 0.0
        %478 = vmatprep.subr.mxu0 0.0
        %479 = vmatpush1.msra.mxu0 %v272
        %480 = vmatprep.subr.mxu0 0.0
        %481 = vmatpush2.msra.mxu0 0.0
        %482 = vmatprep.subr.mxu0 0.0
        %483 = vmatpush2.msra.mxu0 0.0
        %484 = vmatprep.subr.mxu0 0.0
        %485 = vmatpush2.msra.mxu0 0.0
        %486 = vmatprep.subr.mxu0 0.0
        %487 = vmatpush2.msra.mxu0 0.0
        %488 = vmatprep.subr.mxu0 0.0
        %489 = vmatpush2.msra.mxu0 0.0
        %490 = vmatprep.subr.mxu0 0.0
        %491 = vmatpush2.msra.mxu0 0.0
        %492 = vmatprep.subr.mxu0 0.0
        %493 = vmatpush2.msra.mxu0 0.0
        %494 = vmatprep.subr.mxu0 0.0
        %495 = vmatpush2.msra.mxu0 0.0
        %496 = vmatprep.subr.mxu0 0.0
        %497 = vmatpush2.msra.mxu0 0.0
        %498 = vmatprep.subr.mxu0 0.0
        %499 = vmatpush2.msra.mxu0 0.0
        %500 = vmatprep.subr.mxu0 0.0
        %501 = vmatpush2.msra.mxu0 0.0
        %502 = vmatprep.subr.mxu0 0.0
        %503 = vmatpush2.msra.mxu0 0.0
        %504 = vmatprep.subr.mxu0 0.0
        %505 = vmatpush2.msra.mxu0 0.0
        %506 = vmatprep.subr.mxu0 0.0
        %507 = vmatpush2.msra.mxu0 0.0
        %508 = vmatprep.subr.mxu0 0.0
        %509 = vmatpush2.msra.mxu0 0.0
        %510 = vmatprep.subr.mxu0 0.0
        %511 = vmatpush2.msra.mxu0 0.0
        %512 = vmatprep.mubr.f32.mxu0 0.0
        %513 = vmatmul.mubr.f32.gmra.mxu0 %v446
        %v514 = vpop.f32.mrf.mxu0
        %v515 = vadd.f32 0.0, %v514
        %v516 = vpop.f32.mrf.mxu0
        %517 = vdwg.mxu0
        %v518 = vld [vmem:[%s4] sm:$0xff]
        %v519 = vld [vmem:[%s4 + $0x8] sm:$0xff]
        %v520 = vld [vmem:[%s4 + $0x10] sm:$0xff]
        %v521 = vld [vmem:[%s4 + $0x18] sm:$0xff]
        %v522 = vld [vmem:[%s5] sm:$0xff]
        %v523 = vld [vmem:[%s5 + $0x8] sm:$0xff]
        %v524 = vld [vmem:[%s5 + $0x10] sm:$0xff]
        %v525 = vld [vmem:[%s5 + $0x18] sm:$0xff]
        %v527 = vsel %vm277, %v515, 0
        %529 = vmatprep.subr.mxu0 0.0
        %530 = vmatpush1.msra.mxu0 0.0
        %531 = vmatprep.subr.mxu0 0.0
        %532 = vmatpush1.msra.mxu0 0.0
        %533 = vmatprep.subr.mxu0 0.0
        %534 = vmatpush1.msra.mxu0 0.0
        %535 = vmatprep.subr.mxu0 0.0
        %536 = vmatpush1.msra.mxu0 0.0
        %537 = vmatprep.subr.mxu0 0.0
        %538 = vmatpush1.msra.mxu0 0.0
        %539 = vmatprep.subr.mxu0 0.0
        %540 = vmatpush1.msra.mxu0 0.0
        %541 = vmatprep.subr.mxu0 0.0
        %542 = vmatpush1.msra.mxu0 0.0
        %543 = vmatprep.subr.mxu0 0.0
        %544 = vmatpush1.msra.mxu0 0.0
        %545 = vmatprep.subr.mxu0 0.0
        %546 = vmatpush1.msra.mxu0 0.0
        %547 = vmatprep.subr.mxu0 0.0
        %548 = vmatpush1.msra.mxu0 0.0
        %549 = vmatprep.subr.mxu0 0.0
        %550 = vmatpush1.msra.mxu0 0.0
        %551 = vmatprep.subr.mxu0 0.0
        %552 = vmatpush1.msra.mxu0 0.0
        %553 = vmatprep.subr.mxu0 0.0
        %554 = vmatpush1.msra.mxu0 %v525
        %555 = vmatprep.subr.mxu0 0.0
        %556 = vmatpush1.msra.mxu0 %v524
        %557 = vmatprep.subr.mxu0 0.0
        %558 = vmatpush1.msra.mxu0 %v523
        %559 = vmatprep.subr.mxu0 0.0
        %560 = vmatpush1.msra.mxu0 %v522
        %561 = vmatprep.subr.mxu0 0.0
        %562 = vmatpush2.msra.mxu0 0.0
        %563 = vmatprep.subr.mxu0 0.0
        %564 = vmatpush2.msra.mxu0 0.0
        %565 = vmatprep.subr.mxu0 0.0
        %566 = vmatpush2.msra.mxu0 0.0
        %567 = vmatprep.subr.mxu0 0.0
        %568 = vmatpush2.msra.mxu0 0.0
        %569 = vmatprep.subr.mxu0 0.0
        %570 = vmatpush2.msra.mxu0 0.0
        %571 = vmatprep.subr.mxu0 0.0
        %572 = vmatpush2.msra.mxu0 0.0
        %573 = vmatprep.subr.mxu0 0.0
        %574 = vmatpush2.msra.mxu0 0.0
        %575 = vmatprep.subr.mxu0 0.0
        %576 = vmatpush2.msra.mxu0 0.0
        %577 = vmatprep.subr.mxu0 0.0
        %578 = vmatpush2.msra.mxu0 0.0
        %579 = vmatprep.subr.mxu0 0.0
        %580 = vmatpush2.msra.mxu0 0.0
        %581 = vmatprep.subr.mxu0 0.0
        %582 = vmatpush2.msra.mxu0 0.0
        %583 = vmatprep.subr.mxu0 0.0
        %584 = vmatpush2.msra.mxu0 0.0
        %585 = vmatprep.subr.mxu0 0.0
        %586 = vmatpush2.msra.mxu0 0.0
        %587 = vmatprep.subr.mxu0 0.0
        %588 = vmatpush2.msra.mxu0 0.0
        %589 = vmatprep.subr.mxu0 0.0
        %590 = vmatpush2.msra.mxu0 0.0
        %591 = vmatprep.subr.mxu0 0.0
        %592 = vmatpush2.msra.mxu0 0.0
        %593 = vmatprep.mubr.f32.mxu0 0.0
        %594 = vmatmul.mubr.f32.gmra.mxu0 %v527
        %v595 = vpop.f32.mrf.mxu0
        %v596 = vadd.f32 0.0, %v595
        %v597 = vpop.f32.mrf.mxu0
        %598 = vdwg.mxu0
        %599 = vmatprep.subr.mxu0 0.0
        %600 = vmatpush1.msra.mxu0 0.0
        %601 = vmatprep.subr.mxu0 0.0
        %602 = vmatpush1.msra.mxu0 0.0
        %603 = vmatprep.subr.mxu0 0.0
        %604 = vmatpush1.msra.mxu0 0.0
        %605 = vmatprep.subr.mxu0 0.0
        %606 = vmatpush1.msra.mxu0 0.0
        %607 = vmatprep.subr.mxu0 0.0
        %608 = vmatpush1.msra.mxu0 0.0
        %609 = vmatprep.subr.mxu0 0.0
        %610 = vmatpush1.msra.mxu0 0.0
        %611 = vmatprep.subr.mxu0 0.0
        %612 = vmatpush1.msra.mxu0 0.0
        %613 = vmatprep.subr.mxu0 0.0
        %614 = vmatpush1.msra.mxu0 0.0
        %615 = vmatprep.subr.mxu0 0.0
        %616 = vmatpush1.msra.mxu0 0.0
        %617 = vmatprep.subr.mxu0 0.0
        %618 = vmatpush1.msra.mxu0 0.0
        %619 = vmatprep.subr.mxu0 0.0
        %620 = vmatpush1.msra.mxu0 0.0
        %621 = vmatprep.subr.mxu0 0.0
        %622 = vmatpush1.msra.mxu0 0.0
        %623 = vmatprep.subr.mxu0 0.0
        %624 = vmatpush1.msra.mxu0 %v521
        %625 = vmatprep.subr.mxu0 0.0
        %626 = vmatpush1.msra.mxu0 %v520
        %627 = vmatprep.subr.mxu0 0.0
        %628 = vmatpush1.msra.mxu0 %v519
        %629 = vmatprep.subr.mxu0 0.0
        %630 = vmatpush1.msra.mxu0 %v518
        %631 = vmatprep.subr.mxu0 0.0
        %632 = vmatpush2.msra.mxu0 0.0
        %633 = vmatprep.subr.mxu0 0.0
        %634 = vmatpush2.msra.mxu0 0.0
        %635 = vmatprep.subr.mxu0 0.0
        %636 = vmatpush2.msra.mxu0 0.0
        %637 = vmatprep.subr.mxu0 0.0
        %638 = vmatpush2.msra.mxu0 0.0
        %639 = vmatprep.subr.mxu0 0.0
        %640 = vmatpush2.msra.mxu0 0.0
        %641 = vmatprep.subr.mxu0 0.0
        %642 = vmatpush2.msra.mxu0 0.0
        %643 = vmatprep.subr.mxu0 0.0
        %644 = vmatpush2.msra.mxu0 0.0
        %645 = vmatprep.subr.mxu0 0.0
        %646 = vmatpush2.msra.mxu0 0.0
        %647 = vmatprep.subr.mxu0 0.0
        %648 = vmatpush2.msra.mxu0 0.0
        %649 = vmatprep.subr.mxu0 0.0
        %650 = vmatpush2.msra.mxu0 0.0
        %651 = vmatprep.subr.mxu0 0.0
        %652 = vmatpush2.msra.mxu0 0.0
        %653 = vmatprep.subr.mxu0 0.0
        %654 = vmatpush2.msra.mxu0 0.0
        %655 = vmatprep.subr.mxu0 0.0
        %656 = vmatpush2.msra.mxu0 0.0
        %657 = vmatprep.subr.mxu0 0.0
        %658 = vmatpush2.msra.mxu0 0.0
        %659 = vmatprep.subr.mxu0 0.0
        %660 = vmatpush2.msra.mxu0 0.0
        %661 = vmatprep.subr.mxu0 0.0
        %662 = vmatpush2.msra.mxu0 0.0
        %663 = vmatprep.mubr.f32.mxu0 0.0
        %664 = vmatmul.mubr.f32.gmra.mxu0 %v279
        %v665 = vpop.f32.mrf.mxu0
        %v666 = vadd.f32 %v596, %v665
        %v667 = vpop.f32.mrf.mxu0
        %668 = vdwg.mxu0
        %v669 = vld [vmem:[%s6] sm:$0x1]
        %v671 = vlaneseq
        %v672 = vshrl.u32 %v671, 7
        %v673 = vsub.s32 0, %v672
        %v674 = vrot.slane %v669, %v673
        %v676 = vadd.f32 %v666, %v674
        %v677 = vtanh.pop %v676
        %678 = vst.msk [vmem:[%s262] sm:$0xff] %vm277, %v677
        %s679 = sand.u32 %s171, 1
        %s680 = scalar_lea.sflag [#allocation5], %s679
        %s681 = sand.u32 %s171, 1
        %s682 = smul.addr %s681, 8
        %s683 = scalar_lea.vmem [#allocation4], %s682
        // Predicated region
        $region45: #{attention_pallas.1} parent=43 // pred_check
          %p684 = pneg %p181
        $region46: #{attention_pallas.1} parent=43 // pred_check_branch
          %686 = sbr.rel (%p684) target = $region48
        $region47: #{attention_pallas.1} parent=43 // pred_region
          %s688 = ssub.s32 128, 128
          %689 = vsyncadd %s680, %s688
          %s690 = smul.addr %s27, 128
          %s691 = scalar_lea.hbm %s7, %s690
          %s693 = sshll.u32 %s683, 4
          %s694 = int_to_ptr.vmem [resolvable:$true] %s693
          %696 = dma.vmem_to_hbm [thread:$0]  %s694, 128, %s691, %s680
        $region48: #{attention_pallas.1} parent=43 // pred_fallthru
          _
      $region44: #{attention_pallas.1} parent=5 // pred_fallthru
        _
      %p697 = scmp.le.s32.totalorder 2, %s22
      // Predicated region
      $region49: #{attention_pallas.1} parent=5 // pred_check
        %p698 = pneg %p697
      $region50: #{attention_pallas.1} parent=5 // pred_check_branch
        %700 = sbr.rel (%p698) target = $region52
      $region51: #{attention_pallas.1} parent=5 // pred_region
        %s701 = ssub.s32 %s22, 2
        // Predicated region
        $region53: #{attention_pallas.1} parent=51 // pred_check
          %p702 = pneg %p187
        $region54: #{attention_pallas.1} parent=51 // pred_check_branch
          %704 = sbr.rel (%p702) target = $region56
        $region55: #{attention_pallas.1} parent=51 // pred_region
          %s705 = sand.u32 %s172, 1
          %s706 = scalar_lea.sflag [#allocation5], %s705
          %s707 = sand.u32 %s172, 1
          %s708 = smul.addr %s707, 8
          %s709 = scalar_lea.vmem [#allocation4], %s708
          %710 = dma.done %s706, 128
        $region56: #{attention_pallas.1} parent=51 // pred_fallthru
          _
      $region52: #{attention_pallas.1} parent=5 // pred_fallthru
        _
    $region6: #{attention_pallas.1} parent=1 // loop_footer
      %s26 = sadd.s32 1, %s22
    $region7: #{attention_pallas.1} parent=1 // loop_footer_branch
      %21 = sbr.rel target = $region3
    $region8: #{attention_pallas.1} parent=1 // loop_exit
      _
    %711 = vsyncpa [#allocation5], 1
    %s712 = scalar_lea.sflag [#allocation5], 1
    %713 = vsyncpa %s712, 1

</llo_original>
